<compile_context>
chip_gen: v7x
topology: tpu7x:2x2x1
jax: 0.10.0
libtpu: 0.0.40
codegen_flags: <defaults>
</compile_context>

<pallas_src>
import functools

import numpy as np
import jax
import jax.numpy as jnp
from jax.experimental import pallas as pl
from jax.experimental.pallas import tpu as pltpu


# ---------------------------------------------------------------------------
# Parameter construction (mirrors Downsample1D.__init__)
# ---------------------------------------------------------------------------
_BINOMIAL = {
    1: [1.0],
    2: [1.0, 1.0],
    3: [1.0, 2.0, 1.0],
    4: [1.0, 3.0, 3.0, 1.0],
    5: [1.0, 4.0, 6.0, 4.0, 1.0],
    6: [1.0, 5.0, 10.0, 10.0, 5.0, 1.0],
    7: [1.0, 6.0, 15.0, 20.0, 15.0, 6.0, 1.0],
}


def make_downsample1d_filter(channels, filt_size=3):
    """Returns the registered buffer `filt` of shape (channels, 1, filt_size)."""
    a = np.asarray(_BINOMIAL[filt_size], dtype=np.float32)
    a = a / a.sum()
    filt = np.broadcast_to(a[None, None, :], (channels, 1, filt_size)).copy()
    return jnp.asarray(filt)


def _pad_1d(x, pad_l, pad_r, pad_type):
    pads = ((0, 0), (0, 0), (pad_l, pad_r))
    if pad_type in ("refl", "reflect"):
        return jnp.pad(x, pads, mode="reflect")        # == nn.ReflectionPad1d
    if pad_type in ("repl", "replicate"):
        return jnp.pad(x, pads, mode="edge")           # == nn.ReplicationPad1d
    if pad_type == "zero":
        return jnp.pad(x, pads, mode="constant")       # == nn.ZeroPad1d
    raise ValueError(f"Pad type [{pad_type}] not recognized")


# ---------------------------------------------------------------------------
# Pallas kernel
#   x_ref:    VMEM (R_tile, L)      — rows = B*C slice, length contiguous on lanes
#   o_ref:    VMEM (R_tile, L_out)  — lane-dense output block
#   xpad_ref: VMEM scratch (base + L + pad_r, R_tile), f32:
#             the *padded, transposed* tile; length on sublanes so the stride-s
#             conv taps are sublane-strided loads (well supported by Mosaic).
# ---------------------------------------------------------------------------
def _downsample1d_kernel(x_ref, o_ref, xpad_ref, *,
                         taps, stride, pad_l, pad_r, pad_type, base):
    R_t, L = x_ref.shape
    L_out = o_ref.shape[1]
    filt_size = len(taps)

    # ---- fused padding: build padded+transposed tile in VMEM scratch --------
    xt = jnp.transpose(x_ref[...].astype(jnp.float32))          # (L, R_t), on-chip
    xpad_ref[base:base + L, :] = xt                              # sublane-aligned interior

    def _pad_src(i_pad, left):
        if pad_type in ("refl", "reflect"):
            return (pad_l - i_pad) if left else (L - 2 - i_pad)
        if pad_type in ("repl", "replicate"):
            return 0 if left else (L - 1)
        return None                                              # zero pad

    for i in range(pad_l):                                       # left boundary cols
        src = _pad_src(i, left=True)
        row = base - pad_l + i
        if src is None:
            xpad_ref[row:row + 1, :] = jnp.zeros((1, R_t), jnp.float32)
        else:
            xpad_ref[row:row + 1, :] = xt[src:src + 1, :]
    for j in range(pad_r):                                       # right boundary cols
        src = _pad_src(j, left=False)
        row = base + L + j
        if src is None:
            xpad_ref[row:row + 1, :] = jnp.zeros((1, R_t), jnp.float32)
        else:
            xpad_ref[row:row + 1, :] = xt[src:src + 1, :]

    start = base - pad_l                                         # scratch row of xp[0]

    # ---- strided depthwise conv (f32 accumulation) ---------------------------
    if stride == 2:
        # Two sublane-strided streams only; taps k=0,2,... reuse the even stream.
        even_ks = [k for k in range(filt_size) if k % 2 == 0]
        odd_ks = [k for k in range(filt_size) if k % 2 == 1]
        n_even = even_ks[-1] // 2 + L_out
        ev = xpad_ref[pl.ds(start, n_even, 2), :]                # (n_even, R_t)
        acc = taps[0] * ev[0:L_out]                              # init with first tap
        for k in even_ks[1:]:
            off = k // 2
            acc = acc + taps[k] * ev[off:off + L_out]
        if odd_ks:
            n_odd = (odd_ks[-1] - 1) // 2 + L_out
            od = xpad_ref[pl.ds(start + 1, n_odd, 2), :]         # (n_odd, R_t)
            for k in odd_ks:
                off = (k - 1) // 2
                acc = acc + taps[k] * od[off:off + L_out]
    else:
        def tap_slice(k):
            s0 = start + k
            if stride == 1:
                return xpad_ref[s0:s0 + L_out, :]
            return xpad_ref[pl.ds(s0, L_out, stride), :]
        acc = taps[0] * tap_slice(0)
        for k in range(1, filt_size):
            acc = acc + taps[k] * tap_slice(k)

    # Lane-dense output write: (R_t, L_out), L_out on lanes.
    o_ref[...] = jnp.transpose(acc).astype(o_ref.dtype)


# ---------------------------------------------------------------------------
# Tile sizing: rows (B*C) per grid step.
# ---------------------------------------------------------------------------
def _pick_r_tile(R, L, itemsize):
    if R % 8 != 0:
        return R                    # full-dim block (allowed); B*C is usually a multiple of 8
    per_row_bytes = 8 * L * max(int(itemsize), 4)     # ~8 live f32 row-copies per block
    vmem_cap = max(8, (24 * 1024 * 1024) // per_row_bytes)   # ~24 MiB -> v7x-safe
    steps_cap = max(8, R // 8)                        # aim for >=8 grid steps
    t = min(R, vmem_cap, steps_cap, 1024)
    t -= t % 8
    t = max(t, 8)
    while R % t != 0:
        t -= 8
    return t


# ---------------------------------------------------------------------------
# Public forward pass (matches Downsample1D.forward)
# ---------------------------------------------------------------------------
def downsample1d(x, *, filt_size=3, stride=2, pad_type="reflect", pad_off=0):
    """x: (B, C, L) in NCL, same as the PyTorch module. Returns (B, C, L_out)."""
    B, C, L = x.shape
    pad_l = int(1.0 * (filt_size - 1) / 2) + pad_off
    pad_r = int(np.ceil(1.0 * (filt_size - 1) / 2)) + pad_off

    if filt_size == 1:
        # Pure strided slicing, no arithmetic — left to XLA glue.
        if pad_off == 0:
            return x[:, :, ::stride]
        return _pad_1d(x, pad_l, pad_r, pad_type)[:, :, ::stride]

    L_pad = L + pad_l + pad_r
    L_out = (L_pad - filt_size) // stride + 1
    R = B * C

    # Module's registered buffer is always the shared normalized binomial.
    a = np.asarray(_BINOMIAL[filt_size], dtype=np.float64)
    taps = tuple(float(t) for t in (a / a.sum()))

    x2 = x.reshape(R, L)                                   # free reshape, no relayout
    R_TILE = _pick_r_tile(R, L, jnp.dtype(x.dtype).itemsize)
    base = ((pad_l + 7) // 8) * 8                          # sublane-aligned interior start
    n_scr_rows = base + L + pad_r

    # TODO(synk): for extremely long L where a full-length row block exceeds the
    # VMEM budget even at R_TILE=8, the length axis would additionally need
    # halo-tiled blocking; not implemented here.

    kernel = functools.partial(
        _downsample1d_kernel, taps=taps, stride=stride,
        pad_l=pad_l, pad_r=pad_r, pad_type=pad_type, base=base)

    out2 = pl.pallas_call(
        kernel,
        out_shape=jax.ShapeDtypeStruct((R, L_out), x.dtype),
        grid=(R // R_TILE,),
        in_specs=[pl.BlockSpec((R_TILE, L), lambda r: (r, 0))],
        out_specs=pl.BlockSpec((R_TILE, L_out), lambda r: (r, 0)),
        scratch_shapes=[pltpu.VMEM((n_scr_rows, R_TILE), jnp.float32)],
        compiler_params=pltpu.CompilerParams(
            dimension_semantics=("parallel",),
            vmem_limit_bytes=48 * 1024 * 1024),
    )(x2)

    return out2.reshape(B, C, L_out)                       # free reshape back to NCL


# ---------------------------------------------------------------------------
# Pure-JAX reference (general per-channel conv, for correctness checking only)
# ---------------------------------------------------------------------------
def _downsample1d_ref(x, filt, *, filt_size=3, stride=2, pad_type="reflect", pad_off=0):
    B, C, L = x.shape
    pad_l = int(1.0 * (filt_size - 1) / 2) + pad_off
    pad_r = int(np.ceil(1.0 * (filt_size - 1) / 2)) + pad_off
    xp = _pad_1d(x, pad_l, pad_r, pad_type)
    L_pad = L + pad_l + pad_r
    L_out = (L_pad - filt_size) // stride + 1
    taps = filt[:, 0, :]                                   # (C, filt_size)
    out = jnp.zeros((B, C, L_out), jnp.float32)
    for k in range(filt_size):
        sl = xp[:, :, k:k + stride * (L_out - 1) + 1:stride]
        out = out + taps[None, :, k:k + 1] * sl.astype(jnp.float32)
    return out.astype(x.dtype)


if __name__ == "__main__":
    key = jax.random.PRNGKey(0)

    # --- main check: module defaults (reflect, filt_size=3, stride=2) --------
    B, C, L = 2, 4, 16
    filt_size, stride = 3, 2
    x = jax.random.normal(key, (B, C, L), dtype=jnp.float32)
    out = downsample1d(x, filt_size=filt_size, stride=stride,
                       pad_type="reflect", pad_off=0)
    out = jax.block_until_ready(out)
    filt = make_downsample1d_filter(C, filt_size)
    ref = _downsample1d_ref(x, filt, filt_size=filt_size, stride=stride,
                            pad_type="reflect", pad_off=0)
    assert out.shape == (B, C, (L + 2 - filt_size) // stride + 1), out.shape
    np.testing.assert_allclose(np.asarray(out), np.asarray(ref), rtol=1e-5, atol=1e-5)

    # --- secondary check: odd L, filt_size=5, replicate pad, multi-step grid --
    B2, C2, L2 = 2, 8, 15
    fs2 = 5
    x2 = jax.random.normal(jax.random.PRNGKey(1), (B2, C2, L2), dtype=jnp.float32)
    out2 = downsample1d(x2, filt_size=fs2, stride=2, pad_type="replicate", pad_off=0)
    out2 = jax.block_until_ready(out2)
    ref2 = _downsample1d_ref(x2, make_downsample1d_filter(C2, fs2),
                             filt_size=fs2, stride=2, pad_type="replicate", pad_off=0)
    np.testing.assert_allclose(np.asarray(out2), np.asarray(ref2), rtol=1e-5, atol=1e-5)

    print("KERNEL_OK")
</pallas_src>

<mosaic_0001>
module attributes {stable_mosaic.version = 11 : i64} {
  func.func @_downsample1d_kernel(%arg0: i32, %arg1: memref<8x16xf32, #tpu.memory_space<vmem>>, %arg2: memref<8x8xf32, #tpu.memory_space<vmem>>, %arg3: memref<25x8xf32, #tpu.memory_space<vmem>>) attributes {dimension_semantics = [#tpu.dimension_semantics<parallel>], iteration_bounds = array<i64: 1>, scalar_prefetch = 0 : i64, scratch_operands = 1 : i64, tpu.core_type = #tpu.core_type<tc>, window_params = [{transform_indices = @transform_0, window_bounds = array<i64: 8, 16>}, {transform_indices = @transform_1, window_bounds = array<i64: 8, 8>}]} {
    %c0 = arith.constant 0 : index
    %c0_0 = arith.constant 0 : index
    %0 = vector.load %arg1[%c0, %c0_0] : memref<8x16xf32, #tpu.memory_space<vmem>>, vector<8x16xf32>
    %1 = tpu.transpose %0, [1, 0] : vector<8x16xf32> -> vector<16x8xf32>
    %c8 = arith.constant 8 : index
    %c0_1 = arith.constant 0 : index
    %2 = vector.load %arg3[%c8, %c0_1] : memref<25x8xf32, #tpu.memory_space<vmem>>, vector<16x8xf32>
    tpu.vector_store %arg3[%c8, %c0_1], %1 {strides = array<i32>} : memref<25x8xf32, #tpu.memory_space<vmem>>, vector<16x8xf32>,
    %3 = vector.extract_strided_slice %1 {offsets = [1, 0], sizes = [1, 8], strides = [1, 1]} : vector<16x8xf32> to vector<1x8xf32>
    %c7 = arith.constant 7 : index
    %c0_2 = arith.constant 0 : index
    %4 = vector.load %arg3[%c7, %c0_2] : memref<25x8xf32, #tpu.memory_space<vmem>>, vector<1x8xf32>
    tpu.vector_store %arg3[%c7, %c0_2], %3 {strides = array<i32>} : memref<25x8xf32, #tpu.memory_space<vmem>>, vector<1x8xf32>,
    %5 = vector.extract_strided_slice %1 {offsets = [14, 0], sizes = [1, 8], strides = [1, 1]} : vector<16x8xf32> to vector<1x8xf32>
    %c24 = arith.constant 24 : index
    %c0_3 = arith.constant 0 : index
    %6 = vector.load %arg3[%c24, %c0_3] : memref<25x8xf32, #tpu.memory_space<vmem>>, vector<1x8xf32>
    tpu.vector_store %arg3[%c24, %c0_3], %5 {strides = array<i32>} : memref<25x8xf32, #tpu.memory_space<vmem>>, vector<1x8xf32>,
    %c7_4 = arith.constant 7 : index
    %c0_5 = arith.constant 0 : index
    %7 = tpu.strided_load %arg3[%c7_4, %c0_5] {strides = array<i32: 2, 1>} : memref<25x8xf32, #tpu.memory_space<vmem>>, vector<9x8xf32>
    %8 = vector.extract_strided_slice %7 {offsets = [0, 0], sizes = [8, 8], strides = [1, 1]} : vector<9x8xf32> to vector<8x8xf32>
    %cst = arith.constant 2.500000e-01 : f32
    %9 = vector.broadcast %cst : f32 to vector<8x8xf32>
    %10 = arith.mulf %9, %8 : vector<8x8xf32>
    %11 = vector.extract_strided_slice %7 {offsets = [1, 0], sizes = [8, 8], strides = [1, 1]} : vector<9x8xf32> to vector<8x8xf32>
    %cst_6 = arith.constant 2.500000e-01 : f32
    %12 = vector.broadcast %cst_6 : f32 to vector<8x8xf32>
    %13 = arith.mulf %12, %11 : vector<8x8xf32>
    %14 = arith.addf %10, %13 : vector<8x8xf32>
    %c8_7 = arith.constant 8 : index
    %c0_8 = arith.constant 0 : index
    %15 = tpu.strided_load %arg3[%c8_7, %c0_8] {strides = array<i32: 2, 1>} : memref<25x8xf32, #tpu.memory_space<vmem>>, vector<8x8xf32>
    %cst_9 = arith.constant 5.000000e-01 : f32
    %16 = vector.broadcast %cst_9 : f32 to vector<8x8xf32>
    %17 = arith.mulf %16, %15 : vector<8x8xf32>
    %18 = arith.addf %14, %17 : vector<8x8xf32>
    %19 = tpu.transpose %18, [1, 0] : vector<8x8xf32> -> vector<8x8xf32>
    %c0_10 = arith.constant 0 : index
    %c0_11 = arith.constant 0 : index
    %20 = vector.load %arg2[%c0_10, %c0_11] : memref<8x8xf32, #tpu.memory_space<vmem>>, vector<8x8xf32>
    tpu.vector_store %arg2[%c0_10, %c0_11], %19 {strides = array<i32>} : memref<8x8xf32, #tpu.memory_space<vmem>>, vector<8x8xf32>,
    return
  }
  func.func @transform_0(%arg0: i32) -> (i32, i32) {
    %c0_i32 = arith.constant 0 : i32
    %c0_i32_0 = arith.constant 0 : i32
    return %arg0, %c0_i32 : i32, i32
  }
  func.func @transform_1(%arg0: i32) -> (i32, i32) {
    %c0_i32 = arith.constant 0 : i32
    %c0_i32_0 = arith.constant 0 : i32
    return %arg0, %c0_i32 : i32, i32
  }
}

</mosaic_0001>

<llo_original>
// kernel: tpu_custom_call.1
$region0: #{tpu_custom_call.1}
  #allocation0 [shape = 'u32[]', space=smem, size = 0x4, offset = 0x4, fixed_abs, tag = 'smem constant byte address 0x4 - core index']
  #allocation1 [shape = 'u32[144,128]{1,0:T(1,128)}', space=vmem, size = 0x12000, scoped, tag = 'internal scratch']
  #allocation2 [shape = 'f32[25,8]{1,0:T(8,128)}', space=vmem, size = 0x4000, scoped, tag = 'scratch operand']
  %s0 = inlined_call_operand.hbm [shape: f32[8,16], index: 0, kind: input, shape index: {}]
  %s1 = inlined_call_operand.hbm [shape: f32[8,8], index: 1, kind: output, shape index: {}]
  %s2 = sld [smem:[#allocation0]]
  $region18: #{tpu_custom_call.1} parent=0
    _
  %s4 = ssub.s32 1, %s2
  %s5 = scalar_select 0, %s4, %s2
  $region1: #{tpu_custom_call.1} parent=0
    #allocation3 [shape = 'u8[4096]{0}', space=vmem, size = 0x1000, scoped, tag = 'input window, operand 0, single buffered']
    #allocation4 [shape = 's32[1]{0}', space=sflag, size = 0x4, scoped, tag = 'scoped memory for tpu_custom_call.1']
    #allocation5 [shape = 's32[1]{0}', space=sflag, size = 0x4, scoped, tag = 'scoped memory for tpu_custom_call.1']
    #allocation6 [shape = 'u8[4096]{0}', space=vmem, size = 0x1000, scoped, tag = 'output window, operand 0, single buffered']
    %6 = vsyncpa [#allocation4], 0
    %7 = vsyncpa [#allocation5], 0
    // Predicated region
    $region2: #{tpu_custom_call.1} parent=1 // pred_check
      _
    $region3: #{tpu_custom_call.1} parent=1 // pred_check_branch
      %9 = sbr.rel (0) target = $region5
    $region4: #{tpu_custom_call.1} parent=1 // pred_region
      %s11 = ssub.s32 128, 128
      %12 = vsyncadd [#allocation4], %s11
      %s14 = sshll.u32 [#allocation3], 4
      %s15 = int_to_ptr.vmem [resolvable:$true] %s14
      %17 = dma.hbm_to_vmem [thread:$0]  %s0, 128, %s15, [#allocation4]
    $region5: #{tpu_custom_call.1} parent=1 // pred_fallthru
      _
    // Predicated region
    $region6: #{tpu_custom_call.1} parent=1 // pred_check
      _
    $region7: #{tpu_custom_call.1} parent=1 // pred_check_branch
      %19 = sbr.rel (0) target = $region9
    $region8: #{tpu_custom_call.1} parent=1 // pred_region
      %20 = dma.done [#allocation4], 128
    $region9: #{tpu_custom_call.1} parent=1 // pred_fallthru
      _
    %v21 = vld [vmem:[#allocation3] sm:$0xff]
    %22 = vxpose.xlu0.b32.start [1/16] %v21, 128
    %23 = vxpose.xlu0.b32.cont [2/16] 0.0, 128
    %24 = vxpose.xlu0.b32.cont [3/16] 0.0, 128
    %25 = vxpose.xlu0.b32.cont [4/16] 0.0, 128
    %26 = vxpose.xlu0.b32.cont [5/16] 0.0, 128
    %27 = vxpose.xlu0.b32.cont [6/16] 0.0, 128
    %28 = vxpose.xlu0.b32.cont [7/16] 0.0, 128
    %29 = vxpose.xlu0.b32.cont [8/16] 0.0, 128
    %30 = vxpose.xlu0.b32.cont [9/16] 0.0, 128
    %31 = vxpose.xlu0.b32.cont [10/16] 0.0, 128
    %32 = vxpose.xlu0.b32.cont [11/16] 0.0, 128
    %33 = vxpose.xlu0.b32.cont [12/16] 0.0, 128
    %34 = vxpose.xlu0.b32.cont [13/16] 0.0, 128
    %35 = vxpose.xlu0.b32.cont [14/16] 0.0, 128
    %36 = vxpose.xlu0.b32.cont [15/16] 0.0, 128
    %37 = vxpose.xlu0.b32.end [16/16] 0.0, 128
    %v38 = vpop.trf.xlu0
    %v39 = vpop.trf.xlu0
    %v40 = vpop.trf.xlu0
    %v41 = vpop.trf.xlu0
    %v42 = vpop.trf.xlu0
    %v43 = vpop.trf.xlu0
    %v44 = vpop.trf.xlu0
    %v45 = vpop.trf.xlu0
    %v46 = vpop.trf.xlu0
    %v47 = vpop.trf.xlu0
    %v48 = vpop.trf.xlu0
    %v49 = vpop.trf.xlu0
    %v50 = vpop.trf.xlu0
    %v51 = vpop.trf.xlu0
    %v52 = vpop.trf.xlu0
    %v53 = vpop.trf.xlu0
    %vm54 = vcmask 64512
    %55 = vst.msk [vmem:[#allocation2 + $0x8] sm:$0xff] %vm54, %v38
    %56 = vst.msk [vmem:[#allocation2 + $0x10] sm:$0xff] %vm54, %v39
    %vm57 = vcmask 58369
    %58 = vst.msk [vmem:[#allocation2 + $0x6] sm:$0x2] %vm57, %v38
    %vm59 = vcmask 63494
    %60 = vst.msk [vmem:[#allocation2 + $0x12] sm:$0x40] %vm59, %v39
    %s61 = scalar_lea.vmem [#allocation2], 7
    %v62 = vld [vmem:[%s61] ss:$2 sm:$0xff]
    %s63 = scalar_lea.vmem [#allocation2], 23
    %v64 = vld [vmem:[%s63] ss:$2 sm:$0x1]
    %v65 = vmul.f32 %v62, 0.25
    %v66 = vmul.f32 %v64, 0.25
    %vm69 = vcmask 1046528
    %v70 = vrot.slane %v65, 1
    %v71 = vrot.slane %v66, 1
    %v72 = vsel %vm69, %v70, %v71
    %v74 = vadd.f32 %v65, %v72
    %s75 = scalar_lea.vmem [#allocation2], 8
    %v76 = vld [vmem:[%s75] ss:$2 sm:$0xff]
    %v77 = vmul.f32 %v76, 0.5
    %v78 = vadd.f32 %v74, %v77
    %79 = vxpose.xlu0.b32.start [1/16] %v78, 128
    %80 = vxpose.xlu0.b32.cont [2/16] 0.0, 128
    %81 = vxpose.xlu0.b32.cont [3/16] 0.0, 128
    %82 = vxpose.xlu0.b32.cont [4/16] 0.0, 128
    %83 = vxpose.xlu0.b32.cont [5/16] 0.0, 128
    %84 = vxpose.xlu0.b32.cont [6/16] 0.0, 128
    %85 = vxpose.xlu0.b32.cont [7/16] 0.0, 128
    %86 = vxpose.xlu0.b32.cont [8/16] 0.0, 128
    %87 = vxpose.xlu0.b32.cont [9/16] 0.0, 128
    %88 = vxpose.xlu0.b32.cont [10/16] 0.0, 128
    %89 = vxpose.xlu0.b32.cont [11/16] 0.0, 128
    %90 = vxpose.xlu0.b32.cont [12/16] 0.0, 128
    %91 = vxpose.xlu0.b32.cont [13/16] 0.0, 128
    %92 = vxpose.xlu0.b32.cont [14/16] 0.0, 128
    %93 = vxpose.xlu0.b32.cont [15/16] 0.0, 128
    %94 = vxpose.xlu0.b32.end [16/16] 0.0, 128
    %v95 = vpop.trf.xlu0
    %v96 = vpop.trf.xlu0
    %v97 = vpop.trf.xlu0
    %v98 = vpop.trf.xlu0
    %v99 = vpop.trf.xlu0
    %v100 = vpop.trf.xlu0
    %v101 = vpop.trf.xlu0
    %v102 = vpop.trf.xlu0
    %v103 = vpop.trf.xlu0
    %v104 = vpop.trf.xlu0
    %v105 = vpop.trf.xlu0
    %v106 = vpop.trf.xlu0
    %v107 = vpop.trf.xlu0
    %v108 = vpop.trf.xlu0
    %v109 = vpop.trf.xlu0
    %v110 = vpop.trf.xlu0
    %111 = vst.msk [vmem:[#allocation6] sm:$0xff] %vm54, %v95
    // Predicated region
    $region10: #{tpu_custom_call.1} parent=1 // pred_check
      _
    $region11: #{tpu_custom_call.1} parent=1 // pred_check_branch
      %113 = sbr.rel (0) target = $region13
    $region12: #{tpu_custom_call.1} parent=1 // pred_region
      %s115 = ssub.s32 128, 128
      %116 = vsyncadd [#allocation5], %s115
      %s118 = sshll.u32 [#allocation6], 4
      %s119 = int_to_ptr.vmem [resolvable:$true] %s118
      %121 = dma.vmem_to_hbm [thread:$0]  %s119, 128, %s1, [#allocation5]
    $region13: #{tpu_custom_call.1} parent=1 // pred_fallthru
      _
    // Predicated region
    $region14: #{tpu_custom_call.1} parent=1 // pred_check
      _
    $region15: #{tpu_custom_call.1} parent=1 // pred_check_branch
      %123 = sbr.rel (0) target = $region17
    $region16: #{tpu_custom_call.1} parent=1 // pred_region
      %124 = dma.done [#allocation5], 128
    $region17: #{tpu_custom_call.1} parent=1 // pred_fallthru
      _
    %125 = vsyncpa [#allocation4], 1
    %126 = vsyncpa [#allocation5], 1

</llo_original>
